<compile_context>
chip_gen: v7x
topology: tpu7x:2x2x1
jax: 0.10.0
libtpu: 0.0.40
codegen_flags: <defaults>
</compile_context>

<pallas_src>
import jax
import jax.numpy as jnp
from jax.experimental import pallas as pl
from jax.experimental.pallas import tpu as pltpu

_MXU_MIN_K = 8          # below this contraction size, use the VPU FMA path
_LANE = 128


def _round_up(x, m):
    return (x + m - 1) // m * m


def _device_kind():
    try:
        return jax.devices()[0].device_kind.lower()
    except Exception:
        return ""


def _pick_bt(batch, min_parallel):
    """Largest batch-rows-per-step dividing B while keeping the 'parallel'
    grid axis extent >= min_parallel (2 on v7x for its two TensorCores)."""
    for bt in (16, 8, 4, 2):
        if batch % bt == 0 and batch // bt >= min_parallel:
            return bt
    return 1


def _make_kernel(num_layers, relu_flags, bt, nt, compute_dtype):
    """Kernel refs: (x_ref, w0, b0, w1, b1, ..., o_ref, acc_ref).

    x_ref  : (bt, Cin0, nt) VMEM f32, N on lanes
    wi     : (Cout_i, Cin_i) VMEM (f32 for tiny-K layers, bf16 for MXU layers)
    bi     : (Cout_i, 1)     VMEM f32
    o_ref  : (bt, D)         VMEM f32 -- written once per batch block
    acc_ref: (bt, D, 128)    VMEM f32 scratch (per-lane-group running max)
    """
    n_groups = nt // _LANE

    def kernel(x_ref, *refs):
        o_ref = refs[2 * num_layers]
        acc_ref = refs[2 * num_layers + 1]
        n_idx = pl.program_id(1)

        h = x_ref[...].astype(jnp.float32)                 # (bt, Cin0, nt)
        for i in range(num_layers):
            w = refs[2 * i][...]                           # (Cout, Cin)
            bias = refs[2 * i + 1][...]                    # (Cout, 1) f32
            cout, cin = w.shape
            if cin < _MXU_MIN_K:
                # Tiny contraction: a few VPU broadcast FMAs over the whole
                # stacked tile (weights / bias hoisted, no per-row loop).
                wf = w.astype(jnp.float32)
                acc = wf[None, :, 0:1] * h[:, 0:1, :]
                for c in range(1, cin):
                    acc = acc + wf[None, :, c:c + 1] * h[:, c:c + 1, :]
                h = acc + bias[None, :, :]
            else:
                # MXU path: one batched matmul over the whole (bt, Cin, nt)
                # tile -- bf16 operands, f32 accumulation.
                wb = jnp.broadcast_to(w[None], (bt, cout, cin))
                h = jnp.einsum("bok,bkn->bon", wb, h.astype(compute_dtype),
                               preferred_element_type=jnp.float32)
                h = h + bias[None, :, :]
            if relu_flags[i]:
                h = jnp.maximum(h, 0.0)

        # Fold the nt/128 lane groups element-wise (pure VPU); the cross-lane
        # (XLU) reduction is deferred to the last N step.
        m = h[..., 0:_LANE]
        for g in range(1, n_groups):
            m = jnp.maximum(m, h[..., g * _LANE:(g + 1) * _LANE])

        @pl.when(n_idx == 0)
        def _init():
            acc_ref[...] = m

        @pl.when(n_idx > 0)
        def _fold():
            acc_ref[...] = jnp.maximum(acc_ref[...], m)

        @pl.when(n_idx == pl.num_programs(1) - 1)
        def _finalize():
            o_ref[...] = jnp.max(acc_ref[...], axis=-1).astype(o_ref.dtype)

    return kernel


def pointnet_forward(points, weights, biases, relu_flags,
                     *, compute_dtype=jnp.bfloat16):
    """points: [B, C, N] f32.  weights[i]: [Cout_i, Cin_i].  Returns [B, D] f32."""
    B, C, N = points.shape
    num_layers = len(weights)
    D = weights[-1].shape[0]

    kind = _device_kind()
    is_v7 = "v7" in kind
    nt_max = 1024 if is_v7 else 2048     # v7x has half the VMEM
    min_parallel = 2 if is_v7 else 1     # keep both v7x TensorCores busy

    nt = min(nt_max, _round_up(N, _LANE))   # point tile (lanes)
    n_pad = _round_up(N, nt)
    bt = _pick_bt(B, min_parallel)

    x = points
    if n_pad != N:
        # Replicate the last valid point into the padding: duplicated points
        # cannot change a max.  (Exact only because the pooling op is max --
        # would be wrong for mean/sum pooling.)
        x = jnp.pad(x, ((0, 0), (0, 0), (0, n_pad - N)), mode="edge")

    args = [x]
    in_specs = [pl.BlockSpec((bt, C, nt), lambda b, n: (b, 0, n))]
    for w, bvec in zip(weights, biases):
        cout, cin = w.shape
        w = w.astype(compute_dtype if cin >= _MXU_MIN_K else jnp.float32)
        b2d = bvec.astype(jnp.float32).reshape(cout, 1)
        args += [w, b2d]
        in_specs += [pl.BlockSpec((cout, cin), lambda b, n: (0, 0)),
                     pl.BlockSpec((cout, 1), lambda b, n: (0, 0))]

    kernel = _make_kernel(num_layers, tuple(relu_flags), bt, nt, compute_dtype)

    return pl.pallas_call(
        kernel,
        out_shape=jax.ShapeDtypeStruct((B, D), jnp.float32),
        grid_spec=pltpu.PrefetchScalarGridSpec(
            num_scalar_prefetch=0,
            grid=(B // bt, n_pad // nt),                 # (batch, N-reduction)
            in_specs=in_specs,
            out_specs=pl.BlockSpec((bt, D), lambda b, n: (b, 0)),
            scratch_shapes=[pltpu.VMEM((bt, D, _LANE), jnp.float32)],
        ),
        compiler_params=pltpu.CompilerParams(
            dimension_semantics=("parallel", "arbitrary"),
            vmem_limit_bytes=32 * 1024 * 1024),
    )(*args)


def _reference(points, weights, biases, relu_flags):
    """Pure-JAX reference mirroring the PyTorch forward (NCHW 1x1 convs + max)."""
    x = points                                   # [B, C, N]
    for w, b, r in zip(weights, biases, relu_flags):
        x = jnp.einsum("oc,bcn->bon", w, x) + b[None, :, None]
        if r:
            x = jnp.maximum(x, 0.0)
    return jnp.max(x, axis=-1)                   # [B, D]


if __name__ == "__main__":
    # Module config
    in_channel = 4
    mlp = [32, 64]
    relu_flags = [True, True]
    # bn = False  (see TODO above)

    B, C, N = 2, in_channel, 16

    key = jax.random.PRNGKey(0)
    k_x, *k_params = jax.random.split(key, 1 + 2 * len(mlp))

    points = jax.random.normal(k_x, (B, C, N), dtype=jnp.float32)

    # Deterministic parameter init. PyTorch Conv2d weight is [Cout, Cin, 1, 1];
    # stored here as the equivalent [Cout, Cin] matrix.
    dims = [in_channel] + mlp
    weights, biases = [], []
    for i in range(len(mlp)):
        cin, cout = dims[i], dims[i + 1]
        w = jax.random.normal(k_params[2 * i], (cout, cin), dtype=jnp.float32) * 0.1
        b = jax.random.normal(k_params[2 * i + 1], (cout,), dtype=jnp.float32) * 0.1
        weights.append(w)
        biases.append(b)

    out = pointnet_forward(points, weights, biases, relu_flags)
    out = jax.block_until_ready(out)

    ref = _reference(points, weights, biases, relu_flags)
    assert out.shape == (B, mlp[-1])
    # bf16 MXU operands (f32 accumulate) -> slightly loosened tolerance.
    assert jnp.allclose(out, ref, atol=1e-2, rtol=1e-2), "mismatch vs reference"

    print("KERNEL_OK")
</pallas_src>

<mosaic_0001>
module attributes {stable_mosaic.version = 11 : i64} {
  func.func @kernel(%arg0: i32, %arg1: i32, %arg2: memref<2x4x128xf32, #tpu.memory_space<vmem>>, %arg3: memref<32x4xf32, #tpu.memory_space<vmem>>, %arg4: memref<32x1xf32, #tpu.memory_space<vmem>>, %arg5: memref<64x32xbf16, #tpu.memory_space<vmem>>, %arg6: memref<64x1xf32, #tpu.memory_space<vmem>>, %arg7: memref<2x64xf32, #tpu.memory_space<vmem>>, %arg8: memref<2x64x128xf32, #tpu.memory_space<vmem>>) attributes {dimension_semantics = [#tpu.dimension_semantics<parallel>, #tpu.dimension_semantics<arbitrary>], iteration_bounds = array<i64: 1, 1>, scalar_prefetch = 0 : i64, scratch_operands = 1 : i64, tpu.core_type = #tpu.core_type<tc>, window_params = [{transform_indices = @transform_0, window_bounds = array<i64: 2, 4, 128>}, {pipeline_mode = #tpu.pipeline_mode<synchronous>, transform_indices = @transform_1, window_bounds = array<i64: 32, 4>}, {pipeline_mode = #tpu.pipeline_mode<synchronous>, transform_indices = @transform_2, window_bounds = array<i64: 32, 1>}, {pipeline_mode = #tpu.pipeline_mode<synchronous>, transform_indices = @transform_3, window_bounds = array<i64: 64, 32>}, {pipeline_mode = #tpu.pipeline_mode<synchronous>, transform_indices = @transform_4, window_bounds = array<i64: 64, 1>}, {transform_indices = @transform_5, window_bounds = array<i64: 2, 64>}]} {
    %c0 = arith.constant 0 : index
    %c0_0 = arith.constant 0 : index
    %c0_1 = arith.constant 0 : index
    %0 = vector.load %arg2[%c0, %c0_0, %c0_1] : memref<2x4x128xf32, #tpu.memory_space<vmem>>, vector<2x4x128xf32>
    %c0_2 = arith.constant 0 : index
    %c0_3 = arith.constant 0 : index
    %1 = vector.load %arg3[%c0_2, %c0_3] : memref<32x4xf32, #tpu.memory_space<vmem>>, vector<32x4xf32>
    %c0_4 = arith.constant 0 : index
    %c0_5 = arith.constant 0 : index
    %2 = vector.load %arg4[%c0_4, %c0_5] : memref<32x1xf32, #tpu.memory_space<vmem>>, vector<32x1xf32>
    %3 = vector.extract_strided_slice %1 {offsets = [0, 0], sizes = [32, 1], strides = [1, 1]} : vector<32x4xf32> to vector<32x1xf32>
    %4 = vector.shape_cast %3 : vector<32x1xf32> to vector<1x32x1xf32>
    %5 = vector.extract_strided_slice %0 {offsets = [0, 0, 0], sizes = [2, 1, 128], strides = [1, 1, 1]} : vector<2x4x128xf32> to vector<2x1x128xf32>
    %6 = vector.broadcast %4 : vector<1x32x1xf32> to vector<2x32x128xf32>
    %7 = vector.broadcast %5 : vector<2x1x128xf32> to vector<2x32x128xf32>
    %8 = arith.mulf %6, %7 : vector<2x32x128xf32>
    %9 = vector.extract_strided_slice %1 {offsets = [0, 1], sizes = [32, 1], strides = [1, 1]} : vector<32x4xf32> to vector<32x1xf32>
    %10 = vector.shape_cast %9 : vector<32x1xf32> to vector<1x32x1xf32>
    %11 = vector.extract_strided_slice %0 {offsets = [0, 1, 0], sizes = [2, 1, 128], strides = [1, 1, 1]} : vector<2x4x128xf32> to vector<2x1x128xf32>
    %12 = vector.broadcast %10 : vector<1x32x1xf32> to vector<2x32x128xf32>
    %13 = vector.broadcast %11 : vector<2x1x128xf32> to vector<2x32x128xf32>
    %14 = arith.mulf %12, %13 : vector<2x32x128xf32>
    %15 = arith.addf %8, %14 : vector<2x32x128xf32>
    %16 = vector.extract_strided_slice %1 {offsets = [0, 2], sizes = [32, 1], strides = [1, 1]} : vector<32x4xf32> to vector<32x1xf32>
    %17 = vector.shape_cast %16 : vector<32x1xf32> to vector<1x32x1xf32>
    %18 = vector.extract_strided_slice %0 {offsets = [0, 2, 0], sizes = [2, 1, 128], strides = [1, 1, 1]} : vector<2x4x128xf32> to vector<2x1x128xf32>
    %19 = vector.broadcast %17 : vector<1x32x1xf32> to vector<2x32x128xf32>
    %20 = vector.broadcast %18 : vector<2x1x128xf32> to vector<2x32x128xf32>
    %21 = arith.mulf %19, %20 : vector<2x32x128xf32>
    %22 = arith.addf %15, %21 : vector<2x32x128xf32>
    %23 = vector.extract_strided_slice %1 {offsets = [0, 3], sizes = [32, 1], strides = [1, 1]} : vector<32x4xf32> to vector<32x1xf32>
    %24 = vector.shape_cast %23 : vector<32x1xf32> to vector<1x32x1xf32>
    %25 = vector.extract_strided_slice %0 {offsets = [0, 3, 0], sizes = [2, 1, 128], strides = [1, 1, 1]} : vector<2x4x128xf32> to vector<2x1x128xf32>
    %26 = vector.broadcast %24 : vector<1x32x1xf32> to vector<2x32x128xf32>
    %27 = vector.broadcast %25 : vector<2x1x128xf32> to vector<2x32x128xf32>
    %28 = arith.mulf %26, %27 : vector<2x32x128xf32>
    %29 = arith.addf %22, %28 : vector<2x32x128xf32>
    %30 = vector.shape_cast %2 : vector<32x1xf32> to vector<1x32x1xf32>
    %31 = vector.broadcast %30 : vector<1x32x1xf32> to vector<2x32x128xf32>
    %32 = arith.addf %29, %31 : vector<2x32x128xf32>
    %cst = arith.constant 0.000000e+00 : f32
    %33 = vector.broadcast %cst : f32 to vector<2x32x128xf32>
    %34 = arith.maximumf %32, %33 : vector<2x32x128xf32>
    %c0_6 = arith.constant 0 : index
    %c0_7 = arith.constant 0 : index
    %35 = vector.load %arg5[%c0_6, %c0_7] : memref<64x32xbf16, #tpu.memory_space<vmem>>, vector<64x32xbf16>
    %c0_8 = arith.constant 0 : index
    %c0_9 = arith.constant 0 : index
    %36 = vector.load %arg6[%c0_8, %c0_9] : memref<64x1xf32, #tpu.memory_space<vmem>>, vector<64x1xf32>
    %37 = vector.shape_cast %35 : vector<64x32xbf16> to vector<1x64x32xbf16>
    %38 = vector.shape_cast %37 : vector<1x64x32xbf16> to vector<1x64x32xbf16>
    %39 = vector.broadcast %38 : vector<1x64x32xbf16> to vector<2x64x32xbf16>
    %40 = arith.truncf %34 : vector<2x32x128xf32> to vector<2x32x128xbf16>
    "tpu.trace_start"() <{level = 10 : i32, message = "bok,bkn->bon"}> : () -> ()
    %cst_10 = arith.constant dense<0.000000e+00> : vector<2x64x128xf32>
    %41 = tpu.matmul %39, %40, %cst_10 {dimension_numbers = #tpu.dot_dimension_numbers<[2], [1], [1], [2], [0, 0, 0, 1, 1, 2], [0], [0]>} : vector<2x64x32xbf16>, vector<2x32x128xbf16>, vector<2x64x128xf32> -> vector<2x64x128xf32>
    "tpu.trace_stop"() : () -> ()
    %42 = vector.shape_cast %36 : vector<64x1xf32> to vector<1x64x1xf32>
    %43 = vector.broadcast %42 : vector<1x64x1xf32> to vector<2x64x128xf32>
    %44 = arith.addf %41, %43 : vector<2x64x128xf32>
    %cst_11 = arith.constant 0.000000e+00 : f32
    %45 = vector.broadcast %cst_11 : f32 to vector<2x64x128xf32>
    %46 = arith.maximumf %44, %45 : vector<2x64x128xf32>
    %c0_i32 = arith.constant 0 : i32
    %47 = arith.cmpi eq, %arg1, %c0_i32 : i32
    %48 = arith.extui %47 : i1 to i32
    %c0_i32_12 = arith.constant 0 : i32
    %49 = arith.cmpi ne, %48, %c0_i32_12 : i32
    scf.if %49 {
      %c0_17 = arith.constant 0 : index
      %c0_18 = arith.constant 0 : index
      %c0_19 = arith.constant 0 : index
      %56 = vector.load %arg8[%c0_17, %c0_18, %c0_19] : memref<2x64x128xf32, #tpu.memory_space<vmem>>, vector<2x64x128xf32>
      tpu.vector_store %arg8[%c0_17, %c0_18, %c0_19], %46 {strides = array<i32>} : memref<2x64x128xf32, #tpu.memory_space<vmem>>, vector<2x64x128xf32>,
    } else {
    }
    %c0_i32_13 = arith.constant 0 : i32
    %50 = arith.cmpi sgt, %arg1, %c0_i32_13 : i32
    %51 = arith.extui %50 : i1 to i32
    %c0_i32_14 = arith.constant 0 : i32
    %52 = arith.cmpi ne, %51, %c0_i32_14 : i32
    scf.if %52 {
      %c0_17 = arith.constant 0 : index
      %c0_18 = arith.constant 0 : index
      %c0_19 = arith.constant 0 : index
      %56 = vector.load %arg8[%c0_17, %c0_18, %c0_19] : memref<2x64x128xf32, #tpu.memory_space<vmem>>, vector<2x64x128xf32>
      %57 = arith.maximumf %56, %46 : vector<2x64x128xf32>
      %c0_20 = arith.constant 0 : index
      %c0_21 = arith.constant 0 : index
      %c0_22 = arith.constant 0 : index
      %58 = vector.load %arg8[%c0_20, %c0_21, %c0_22] : memref<2x64x128xf32, #tpu.memory_space<vmem>>, vector<2x64x128xf32>
      tpu.vector_store %arg8[%c0_20, %c0_21, %c0_22], %57 {strides = array<i32>} : memref<2x64x128xf32, #tpu.memory_space<vmem>>, vector<2x64x128xf32>,
    } else {
    }
    %c0_i32_15 = arith.constant 0 : i32
    %53 = arith.cmpi eq, %arg1, %c0_i32_15 : i32
    %54 = arith.extui %53 : i1 to i32
    %c0_i32_16 = arith.constant 0 : i32
    %55 = arith.cmpi ne, %54, %c0_i32_16 : i32
    scf.if %55 {
      %c0_17 = arith.constant 0 : index
      %c0_18 = arith.constant 0 : index
      %c0_19 = arith.constant 0 : index
      %56 = vector.load %arg8[%c0_17, %c0_18, %c0_19] : memref<2x64x128xf32, #tpu.memory_space<vmem>>, vector<2x64x128xf32>
      %cst_20 = arith.constant dense<0xFF800000> : vector<2x64xf32>
      %57 = vector.multi_reduction <maximumf>, %56, %cst_20 [2] : vector<2x64x128xf32> to vector<2x64xf32>
      %c0_21 = arith.constant 0 : index
      %c0_22 = arith.constant 0 : index
      %58 = vector.load %arg7[%c0_21, %c0_22] : memref<2x64xf32, #tpu.memory_space<vmem>>, vector<2x64xf32>
      tpu.vector_store %arg7[%c0_21, %c0_22], %57 {strides = array<i32>} : memref<2x64xf32, #tpu.memory_space<vmem>>, vector<2x64xf32>,
    } else {
    }
    return
  }
  func.func @transform_0(%arg0: i32, %arg1: i32) -> (i32, i32, i32) {
    %c0_i32 = arith.constant 0 : i32
    %c0_i32_0 = arith.constant 0 : i32
    return %arg0, %c0_i32, %arg1 : i32, i32, i32
  }
  func.func @transform_1(%arg0: i32, %arg1: i32) -> (i32, i32) {
    %c0_i32 = arith.constant 0 : i32
    %c0_i32_0 = arith.constant 0 : i32
    %c0_i32_1 = arith.constant 0 : i32
    return %c0_i32, %c0_i32_0 : i32, i32
  }
  func.func @transform_2(%arg0: i32, %arg1: i32) -> (i32, i32) {
    %c0_i32 = arith.constant 0 : i32
    %c0_i32_0 = arith.constant 0 : i32
    %c0_i32_1 = arith.constant 0 : i32
    return %c0_i32, %c0_i32_0 : i32, i32
  }
  func.func @transform_3(%arg0: i32, %arg1: i32) -> (i32, i32) {
    %c0_i32 = arith.constant 0 : i32
    %c0_i32_0 = arith.constant 0 : i32
    %c0_i32_1 = arith.constant 0 : i32
    return %c0_i32, %c0_i32_0 : i32, i32
  }
  func.func @transform_4(%arg0: i32, %arg1: i32) -> (i32, i32) {
    %c0_i32 = arith.constant 0 : i32
    %c0_i32_0 = arith.constant 0 : i32
    %c0_i32_1 = arith.constant 0 : i32
    return %c0_i32, %c0_i32_0 : i32, i32
  }
  func.func @transform_5(%arg0: i32, %arg1: i32) -> (i32, i32) {
    %c0_i32 = arith.constant 0 : i32
    %c0_i32_0 = arith.constant 0 : i32
    return %arg0, %c0_i32 : i32, i32
  }
}

</mosaic_0001>

<llo_original>
// kernel: tpu_custom_call.1
$region0: #{tpu_custom_call.1}
  #allocation0 [shape = 'u32[]', space=smem, size = 0x4, offset = 0x4, fixed_abs, tag = 'smem constant byte address 0x4 - core index']
  #allocation1 [shape = 'u32[144,128]{1,0:T(1,128)}', space=vmem, size = 0x12000, scoped, tag = 'internal scratch']
  #allocation2 [shape = 'f32[2,64,128]{2,1,0:T(8,128)}', space=vmem, size = 0x10000, scoped, tag = 'scratch operand']
  %s0 = inlined_call_operand.vmem [shape: f32[2,4,128], index: 0, kind: input, shape index: {}]
  %s1 = inlined_call_operand.vmem [shape: f32[32,4], index: 1, kind: input, shape index: {}]
  %s2 = inlined_call_operand.vmem [shape: f32[32,1], index: 2, kind: input, shape index: {}]
  %s3 = inlined_call_operand.vmem [shape: bf16[64,32], index: 3, kind: input, shape index: {}]
  %s4 = inlined_call_operand.vmem [shape: f32[64,1], index: 4, kind: input, shape index: {}]
  %s5 = inlined_call_operand.hbm [shape: f32[2,64], index: 5, kind: output, shape index: {}]
  %s6 = sld [smem:[#allocation0]]
  $region42: #{tpu_custom_call.1} parent=0
    _
  %s8 = ssub.s32 1, %s6
  %s9 = scalar_select 0, %s8, %s6
  $region1: #{tpu_custom_call.1} parent=0
    #allocation3 [shape = 'u8[1024]{0}', space=vmem, size = 0x400, scoped, tag = 'output window, operand 0, single buffered']
    #allocation4 [shape = 's32[1]{0}', space=sflag, size = 0x4, scoped, tag = 'scoped memory for tpu_custom_call.1']
    %10 = vsyncpa [#allocation4], 0
    // Predicated region
    $region2: #{tpu_custom_call.1} parent=1 // pred_check
      _
    $region3: #{tpu_custom_call.1} parent=1 // pred_check_branch
      %12 = sbr.rel (0) target = $region5
    $region4: #{tpu_custom_call.1} parent=1 // pred_region
      _
    $region5: #{tpu_custom_call.1} parent=1 // pred_fallthru
      _
    // Predicated region
    $region6: #{tpu_custom_call.1} parent=1 // pred_check
      _
    $region7: #{tpu_custom_call.1} parent=1 // pred_check_branch
      %14 = sbr.rel (0) target = $region9
    $region8: #{tpu_custom_call.1} parent=1 // pred_region
      _
    $region9: #{tpu_custom_call.1} parent=1 // pred_fallthru
      _
    // Predicated region
    $region10: #{tpu_custom_call.1} parent=1 // pred_check
      _
    $region11: #{tpu_custom_call.1} parent=1 // pred_check_branch
      %16 = sbr.rel (0) target = $region13
    $region12: #{tpu_custom_call.1} parent=1 // pred_region
      _
    $region13: #{tpu_custom_call.1} parent=1 // pred_fallthru
      _
    // Predicated region
    $region14: #{tpu_custom_call.1} parent=1 // pred_check
      _
    $region15: #{tpu_custom_call.1} parent=1 // pred_check_branch
      %18 = sbr.rel (0) target = $region17
    $region16: #{tpu_custom_call.1} parent=1 // pred_region
      _
    $region17: #{tpu_custom_call.1} parent=1 // pred_fallthru
      _
    // Predicated region
    $region18: #{tpu_custom_call.1} parent=1 // pred_check
      _
    $region19: #{tpu_custom_call.1} parent=1 // pred_check_branch
      %20 = sbr.rel (0) target = $region21
    $region20: #{tpu_custom_call.1} parent=1 // pred_region
      _
    $region21: #{tpu_custom_call.1} parent=1 // pred_fallthru
      _
    %v22 = vld [vmem:[%s0] sm:$0xf]
    %v23 = vld [vmem:[%s0 + $0x4] sm:$0xf]
    %v24 = vld [vmem:[%s1] sm:$0xff]
    %v25 = vld [vmem:[%s1 + $0x8] sm:$0xff]
    %v26 = vld [vmem:[%s1 + $0x10] sm:$0xff]
    %v27 = vld [vmem:[%s1 + $0x18] sm:$0xff]
    %v28 = vld [vmem:[%s2] sm:$0xff]
    %v29 = vld [vmem:[%s2 + $0x8] sm:$0xff]
    %v30 = vld [vmem:[%s2 + $0x10] sm:$0xff]
    %v31 = vld [vmem:[%s2 + $0x18] sm:$0xff]
    %33 = vset.pattern.permute.xlu0 0
    %34 = vperm.xlu0 %33, %v24
    %v35 = vpop.permute.xlu0 %34
    %38 = vset.pattern.permute.xlu0 0
    %39 = vperm.xlu0 %38, %v25
    %v40 = vpop.permute.xlu0 %39
    %43 = vset.pattern.permute.xlu0 0
    %44 = vperm.xlu0 %43, %v26
    %v45 = vpop.permute.xlu0 %44
    %48 = vset.pattern.permute.xlu0 0
    %49 = vperm.xlu0 %48, %v27
    %v50 = vpop.permute.xlu0 %49
    %v52 = vlaneseq
    %v53 = vshrl.u32 %v52, 7
    %v54 = vsub.s32 0, %v53
    %v55 = vrot.slane %v22, %v54
    %v56 = vlaneseq
    %v57 = vshrl.u32 %v56, 7
    %v58 = vsub.s32 0, %v57
    %v59 = vrot.slane %v23, %v58
    %v60 = vmul.f32 %v35, %v55
    %v61 = vmul.f32 %v40, %v55
    %v62 = vmul.f32 %v45, %v55
    %v63 = vmul.f32 %v50, %v55
    %v64 = vmul.f32 %v35, %v59
    %v65 = vmul.f32 %v40, %v59
    %v66 = vmul.f32 %v45, %v59
    %v67 = vmul.f32 %v50, %v59
    %68 = vset.pattern.permute.xlu0 1
    %69 = vperm.xlu0 %68, %v24
    %v70 = vpop.permute.xlu0 %69
    %72 = vset.pattern.permute.xlu0 1
    %73 = vperm.xlu0 %72, %v25
    %v74 = vpop.permute.xlu0 %73
    %76 = vset.pattern.permute.xlu0 1
    %77 = vperm.xlu0 %76, %v26
    %v78 = vpop.permute.xlu0 %77
    %80 = vset.pattern.permute.xlu0 1
    %81 = vperm.xlu0 %80, %v27
    %v82 = vpop.permute.xlu0 %81
    %v84 = vlaneseq
    %v85 = vshrl.u32 %v84, 7
    %v86 = vsub.s32 1, %v85
    %v87 = vrot.slane %v22, %v86
    %v88 = vlaneseq
    %v89 = vshrl.u32 %v88, 7
    %v90 = vsub.s32 1, %v89
    %v91 = vrot.slane %v23, %v90
    %v92 = vmul.f32 %v70, %v87
    %v93 = vmul.f32 %v74, %v87
    %v94 = vmul.f32 %v78, %v87
    %v95 = vmul.f32 %v82, %v87
    %v96 = vmul.f32 %v70, %v91
    %v97 = vmul.f32 %v74, %v91
    %v98 = vmul.f32 %v78, %v91
    %v99 = vmul.f32 %v82, %v91
    %v100 = vadd.f32 %v60, %v92
    %v101 = vadd.f32 %v61, %v93
    %v102 = vadd.f32 %v62, %v94
    %v103 = vadd.f32 %v63, %v95
    %v104 = vadd.f32 %v64, %v96
    %v105 = vadd.f32 %v65, %v97
    %v106 = vadd.f32 %v66, %v98
    %v107 = vadd.f32 %v67, %v99
    %108 = vset.pattern.permute.xlu0 2
    %109 = vperm.xlu0 %108, %v24
    %v110 = vpop.permute.xlu0 %109
    %112 = vset.pattern.permute.xlu0 2
    %113 = vperm.xlu0 %112, %v25
    %v114 = vpop.permute.xlu0 %113
    %116 = vset.pattern.permute.xlu0 2
    %117 = vperm.xlu0 %116, %v26
    %v118 = vpop.permute.xlu0 %117
    %120 = vset.pattern.permute.xlu0 2
    %121 = vperm.xlu0 %120, %v27
    %v122 = vpop.permute.xlu0 %121
    %v124 = vlaneseq
    %v125 = vshrl.u32 %v124, 7
    %v126 = vsub.s32 2, %v125
    %v127 = vrot.slane %v22, %v126
    %v128 = vlaneseq
    %v129 = vshrl.u32 %v128, 7
    %v130 = vsub.s32 2, %v129
    %v131 = vrot.slane %v23, %v130
    %v132 = vmul.f32 %v110, %v127
    %v133 = vmul.f32 %v114, %v127
    %v134 = vmul.f32 %v118, %v127
    %v135 = vmul.f32 %v122, %v127
    %v136 = vmul.f32 %v110, %v131
    %v137 = vmul.f32 %v114, %v131
    %v138 = vmul.f32 %v118, %v131
    %v139 = vmul.f32 %v122, %v131
    %v140 = vadd.f32 %v100, %v132
    %v141 = vadd.f32 %v101, %v133
    %v142 = vadd.f32 %v102, %v134
    %v143 = vadd.f32 %v103, %v135
    %v144 = vadd.f32 %v104, %v136
    %v145 = vadd.f32 %v105, %v137
    %v146 = vadd.f32 %v106, %v138
    %v147 = vadd.f32 %v107, %v139
    %148 = vset.pattern.permute.xlu0 3
    %149 = vperm.xlu0 %148, %v24
    %v150 = vpop.permute.xlu0 %149
    %152 = vset.pattern.permute.xlu0 3
    %153 = vperm.xlu0 %152, %v25
    %v154 = vpop.permute.xlu0 %153
    %156 = vset.pattern.permute.xlu0 3
    %157 = vperm.xlu0 %156, %v26
    %v158 = vpop.permute.xlu0 %157
    %160 = vset.pattern.permute.xlu0 3
    %161 = vperm.xlu0 %160, %v27
    %v162 = vpop.permute.xlu0 %161
    %v164 = vlaneseq
    %v165 = vshrl.u32 %v164, 7
    %v166 = vsub.s32 3, %v165
    %v167 = vrot.slane %v22, %v166
    %v168 = vlaneseq
    %v169 = vshrl.u32 %v168, 7
    %v170 = vsub.s32 3, %v169
    %v171 = vrot.slane %v23, %v170
    %v172 = vmul.f32 %v150, %v167
    %v173 = vmul.f32 %v154, %v167
    %v174 = vmul.f32 %v158, %v167
    %v175 = vmul.f32 %v162, %v167
    %v176 = vmul.f32 %v150, %v171
    %v177 = vmul.f32 %v154, %v171
    %v178 = vmul.f32 %v158, %v171
    %v179 = vmul.f32 %v162, %v171
    %v180 = vadd.f32 %v140, %v172
    %v181 = vadd.f32 %v141, %v173
    %v182 = vadd.f32 %v142, %v174
    %v183 = vadd.f32 %v143, %v175
    %v184 = vadd.f32 %v144, %v176
    %v185 = vadd.f32 %v145, %v177
    %v186 = vadd.f32 %v146, %v178
    %v187 = vadd.f32 %v147, %v179
    %189 = vset.pattern.permute.xlu0 0
    %190 = vperm.xlu0 %189, %v28
    %v191 = vpop.permute.xlu0 %190
    %194 = vset.pattern.permute.xlu0 0
    %195 = vperm.xlu0 %194, %v29
    %v196 = vpop.permute.xlu0 %195
    %199 = vset.pattern.permute.xlu0 0
    %200 = vperm.xlu0 %199, %v30
    %v201 = vpop.permute.xlu0 %200
    %204 = vset.pattern.permute.xlu0 0
    %205 = vperm.xlu0 %204, %v31
    %v206 = vpop.permute.xlu0 %205
    %v208 = vadd.f32 %v180, %v191
    %v209 = vadd.f32 %v181, %v196
    %v210 = vadd.f32 %v182, %v201
    %v211 = vadd.f32 %v183, %v206
    %v212 = vadd.f32 %v184, %v191
    %v213 = vadd.f32 %v185, %v196
    %v214 = vadd.f32 %v186, %v201
    %v215 = vadd.f32 %v187, %v206
    %v216 = vmax.f32 %v208, 0.0
    %v217 = vmax.f32 %v209, 0.0
    %v218 = vmax.f32 %v210, 0.0
    %v219 = vmax.f32 %v211, 0.0
    %v220 = vmax.f32 %v212, 0.0
    %v221 = vmax.f32 %v213, 0.0
    %v222 = vmax.f32 %v214, 0.0
    %v223 = vmax.f32 %v215, 0.0
    %v224 = vld [vmem:[%s3] sm:$0xf]
    %v225 = vld [vmem:[%s3 + $0x4] sm:$0xf]
    %v226 = vld [vmem:[%s3 + $0x8] sm:$0xf]
    %v227 = vld [vmem:[%s3 + $0xc] sm:$0xf]
    %v228 = vld [vmem:[%s3 + $0x10] sm:$0xf]
    %v229 = vld [vmem:[%s3 + $0x14] sm:$0xf]
    %v230 = vld [vmem:[%s3 + $0x18] sm:$0xf]
    %v231 = vld [vmem:[%s3 + $0x1c] sm:$0xf]
    %v232 = vld [vmem:[%s4] sm:$0xff]
    %v233 = vld [vmem:[%s4 + $0x8] sm:$0xff]
    %v234 = vld [vmem:[%s4 + $0x10] sm:$0xff]
    %v235 = vld [vmem:[%s4 + $0x18] sm:$0xff]
    %v236 = vld [vmem:[%s4 + $0x20] sm:$0xff]
    %v237 = vld [vmem:[%s4 + $0x28] sm:$0xff]
    %v238 = vld [vmem:[%s4 + $0x30] sm:$0xff]
    %v239 = vld [vmem:[%s4 + $0x38] sm:$0xff]
    %v240 = vpack.c.bf16 %v217, %v216
    %v241 = vpack.c.bf16 %v219, %v218
    %v242 = vpack.c.bf16 %v221, %v220
    %v243 = vpack.c.bf16 %v223, %v222
    %245 = vset.pattern.permute.xlu0 0
    %246 = vperm.xlu0 %245, %v232
    %v247 = vpop.permute.xlu0 %246
    %250 = vset.pattern.permute.xlu0 0
    %251 = vperm.xlu0 %250, %v233
    %v252 = vpop.permute.xlu0 %251
    %255 = vset.pattern.permute.xlu0 0
    %256 = vperm.xlu0 %255, %v234
    %v257 = vpop.permute.xlu0 %256
    %260 = vset.pattern.permute.xlu0 0
    %261 = vperm.xlu0 %260, %v235
    %v262 = vpop.permute.xlu0 %261
    %265 = vset.pattern.permute.xlu0 0
    %266 = vperm.xlu0 %265, %v236
    %v267 = vpop.permute.xlu0 %266
    %270 = vset.pattern.permute.xlu0 0
    %271 = vperm.xlu0 %270, %v237
    %v272 = vpop.permute.xlu0 %271
    %275 = vset.pattern.permute.xlu0 0
    %276 = vperm.xlu0 %275, %v238
    %v277 = vpop.permute.xlu0 %276
    %280 = vset.pattern.permute.xlu0 0
    %281 = vperm.xlu0 %280, %v239
    %v282 = vpop.permute.xlu0 %281
    %v292 = vunpack.c.l.b16 %v224
    %v293 = vunpack.c.l.b16 %v225
    %v294 = vunpack.c.l.b16 %v226
    %v295 = vunpack.c.l.b16 %v227
    %v296 = vunpack.c.l.b16 %v228
    %v297 = vunpack.c.l.b16 %v229
    %v298 = vunpack.c.l.b16 %v230
    %v299 = vunpack.c.l.b16 %v231
    %v300 = vpack.c.b16 %v293, %v292
    %v301 = vpack.c.b16 %v295, %v294
    %v302 = vpack.c.b16 %v297, %v296
    %v303 = vpack.c.b16 %v299, %v298
    %vm304 = vcmask 261120
    %v306 = vsel %vm304, %v300, 0
    %v309 = vsel %vm304, %v301, 0
    %v312 = vsel %vm304, %v302, 0
    %v315 = vsel %vm304, %v303, 0
    %317 = vmatprep.subr.bf16.mxu0 0
    %318 = vmatpush1.bf16.msra.mxu0 %v240
    %319 = vmatprep.subr.bf16.mxu0 0
    %320 = vmatpush1.bf16.msra.mxu0 %v241
    %321 = vmatprep.subr.bf16.mxu0 0
    %322 = vmatpush1.bf16.msra.mxu0 0
    %323 = vmatprep.subr.bf16.mxu0 0
    %324 = vmatpush1.bf16.msra.mxu0 0
    %325 = vmatprep.subr.bf16.mxu0 0
    %326 = vmatpush1.bf16.msra.mxu0 0
    %327 = vmatprep.subr.bf16.mxu0 0
    %328 = vmatpush1.bf16.msra.mxu0 0
    %329 = vmatprep.subr.bf16.mxu0 0
    %330 = vmatpush1.bf16.msra.mxu0 0
    %331 = vmatprep.subr.bf16.mxu0 0
    %332 = vmatpush1.bf16.msra.mxu0 0
    %333 = vmatprep.subr.bf16.mxu0 0
    %334 = vmatpush1.bf16.msra.mxu0 0
    %335 = vmatprep.subr.bf16.mxu0 0
    %336 = vmatpush1.bf16.msra.mxu0 0
    %337 = vmatprep.subr.bf16.mxu0 0
    %338 = vmatpush1.bf16.msra.mxu0 0
    %339 = vmatprep.subr.bf16.mxu0 0
    %340 = vmatpush1.bf16.msra.mxu0 0
    %341 = vmatprep.subr.bf16.mxu0 0
    %342 = vmatpush1.bf16.msra.mxu0 0
    %343 = vmatprep.subr.bf16.mxu0 0
    %344 = vmatpush1.bf16.msra.mxu0 0
    %345 = vmatprep.subr.bf16.mxu0 0
    %346 = vmatpush1.bf16.msra.mxu0 0
    %347 = vmatprep.subr.bf16.mxu0 0
    %348 = vmatpush1.bf16.msra.mxu0 0
    %349 = vmatprep.mubr.bf16.mxu0 0
    %350 = vmatmul.mubr.bf16.gmra.mrb[0].mxu0 %v306
    %v351 = vpop.f32.mrb[0].mxu0
    %v352 = vadd.f32 %v247, %v351
    %v353 = vpop.f32.mrb[0].mxu0
    %v354 = vpop.f32.mrb[0].mxu0
    %v355 = vadd.f32 %v252, %v354
    %v356 = vpop.f32.mrb[0].mxu0
    %357 = vmatprep.mubr.bf16.mxu0 0
    %358 = vmatmul.mubr.bf16.gmra.mrb[0].mxu0 %v309
    %v359 = vpop.f32.mrb[0].mxu0
    %v360 = vadd.f32 %v257, %v359
    %v361 = vpop.f32.mrb[0].mxu0
    %v362 = vpop.f32.mrb[0].mxu0
    %v363 = vadd.f32 %v262, %v362
    %v364 = vpop.f32.mrb[0].mxu0
    %365 = vmatprep.mubr.bf16.mxu0 0
    %366 = vmatmul.mubr.bf16.gmra.mrb[0].mxu0 %v312
    %v367 = vpop.f32.mrb[0].mxu0
    %v368 = vadd.f32 %v267, %v367
    %v369 = vpop.f32.mrb[0].mxu0
    %v370 = vpop.f32.mrb[0].mxu0
    %v371 = vadd.f32 %v272, %v370
    %v372 = vpop.f32.mrb[0].mxu0
    %373 = vmatprep.mubr.bf16.mxu0 0
    %374 = vmatmul.mubr.bf16.gmra.mrb[0].mxu0 %v315
    %v375 = vpop.f32.mrb[0].mxu0
    %v376 = vadd.f32 %v277, %v375
    %v377 = vpop.f32.mrb[0].mxu0
    %v378 = vpop.f32.mrb[0].mxu0
    %v379 = vadd.f32 %v282, %v378
    %v380 = vpop.f32.mrb[0].mxu0
    %381 = vdwg.mxu0
    %382 = vmatprep.subr.bf16.mxu0 0
    %383 = vmatpush1.bf16.msra.mxu0 %v242
    %384 = vmatprep.subr.bf16.mxu0 0
    %385 = vmatpush1.bf16.msra.mxu0 %v243
    %386 = vmatprep.subr.bf16.mxu0 0
    %387 = vmatpush1.bf16.msra.mxu0 0
    %388 = vmatprep.subr.bf16.mxu0 0
    %389 = vmatpush1.bf16.msra.mxu0 0
    %390 = vmatprep.subr.bf16.mxu0 0
    %391 = vmatpush1.bf16.msra.mxu0 0
    %392 = vmatprep.subr.bf16.mxu0 0
    %393 = vmatpush1.bf16.msra.mxu0 0
    %394 = vmatprep.subr.bf16.mxu0 0
    %395 = vmatpush1.bf16.msra.mxu0 0
    %396 = vmatprep.subr.bf16.mxu0 0
    %397 = vmatpush1.bf16.msra.mxu0 0
    %398 = vmatprep.subr.bf16.mxu0 0
    %399 = vmatpush1.bf16.msra.mxu0 0
    %400 = vmatprep.subr.bf16.mxu0 0
    %401 = vmatpush1.bf16.msra.mxu0 0
    %402 = vmatprep.subr.bf16.mxu0 0
    %403 = vmatpush1.bf16.msra.mxu0 0
    %404 = vmatprep.subr.bf16.mxu0 0
    %405 = vmatpush1.bf16.msra.mxu0 0
    %406 = vmatprep.subr.bf16.mxu0 0
    %407 = vmatpush1.bf16.msra.mxu0 0
    %408 = vmatprep.subr.bf16.mxu0 0
    %409 = vmatpush1.bf16.msra.mxu0 0
    %410 = vmatprep.subr.bf16.mxu0 0
    %411 = vmatpush1.bf16.msra.mxu0 0
    %412 = vmatprep.subr.bf16.mxu0 0
    %413 = vmatpush1.bf16.msra.mxu0 0
    %414 = vmatprep.mubr.bf16.mxu0 0
    %415 = vmatmul.mubr.bf16.gmra.mrb[0].mxu0 %v306
    %v416 = vpop.f32.mrb[0].mxu0
    %v417 = vadd.f32 %v247, %v416
    %v418 = vpop.f32.mrb[0].mxu0
    %v419 = vpop.f32.mrb[0].mxu0
    %v420 = vadd.f32 %v252, %v419
    %v421 = vpop.f32.mrb[0].mxu0
    %422 = vmatprep.mubr.bf16.mxu0 0
    %423 = vmatmul.mubr.bf16.gmra.mrb[0].mxu0 %v309
    %v424 = vpop.f32.mrb[0].mxu0
    %v425 = vadd.f32 %v257, %v424
    %v426 = vpop.f32.mrb[0].mxu0
    %v427 = vpop.f32.mrb[0].mxu0
    %v428 = vadd.f32 %v262, %v427
    %v429 = vpop.f32.mrb[0].mxu0
    %430 = vmatprep.mubr.bf16.mxu0 0
    %431 = vmatmul.mubr.bf16.gmra.mrb[0].mxu0 %v312
    %v432 = vpop.f32.mrb[0].mxu0
    %v433 = vadd.f32 %v267, %v432
    %v434 = vpop.f32.mrb[0].mxu0
    %v435 = vpop.f32.mrb[0].mxu0
    %v436 = vadd.f32 %v272, %v435
    %v437 = vpop.f32.mrb[0].mxu0
    %438 = vmatprep.mubr.bf16.mxu0 0
    %439 = vmatmul.mubr.bf16.gmra.mrb[0].mxu0 %v315
    %v440 = vpop.f32.mrb[0].mxu0
    %v441 = vadd.f32 %v277, %v440
    %v442 = vpop.f32.mrb[0].mxu0
    %v443 = vpop.f32.mrb[0].mxu0
    %v444 = vadd.f32 %v282, %v443
    %v445 = vpop.f32.mrb[0].mxu0
    %446 = vdwg.mxu0
    %v447 = vmax.f32 %v352, 0.0
    %v448 = vmax.f32 %v355, 0.0
    %v449 = vmax.f32 %v360, 0.0
    %v450 = vmax.f32 %v363, 0.0
    %v451 = vmax.f32 %v368, 0.0
    %v452 = vmax.f32 %v371, 0.0
    %v453 = vmax.f32 %v376, 0.0
    %v454 = vmax.f32 %v379, 0.0
    %v455 = vmax.f32 %v417, 0.0
    %v456 = vmax.f32 %v420, 0.0
    %v457 = vmax.f32 %v425, 0.0
    %v458 = vmax.f32 %v428, 0.0
    %v459 = vmax.f32 %v433, 0.0
    %v460 = vmax.f32 %v436, 0.0
    %v461 = vmax.f32 %v441, 0.0
    %v462 = vmax.f32 %v444, 0.0
    %p463 = scmp.eq.s32.totalorder 0, 0
    // Predicated region
    $region22: #{tpu_custom_call.1} parent=1 // pred_check
      %p464 = pneg %p463
    $region23: #{tpu_custom_call.1} parent=1 // pred_check_branch
      %466 = sbr.rel (%p464) target = $region25
    $region24: #{tpu_custom_call.1} parent=1 // pred_region
      %467 = vst [vmem:[#allocation2] sm:$0xff] %v447
      %468 = vst [vmem:[#allocation2 + $0x8] sm:$0xff] %v448
      %469 = vst [vmem:[#allocation2 + $0x10] sm:$0xff] %v449
      %470 = vst [vmem:[#allocation2 + $0x18] sm:$0xff] %v450
      %471 = vst [vmem:[#allocation2 + $0x20] sm:$0xff] %v451
      %472 = vst [vmem:[#allocation2 + $0x28] sm:$0xff] %v452
      %473 = vst [vmem:[#allocation2 + $0x30] sm:$0xff] %v453
      %474 = vst [vmem:[#allocation2 + $0x38] sm:$0xff] %v454
      %475 = vst [vmem:[#allocation2 + $0x40] sm:$0xff] %v455
      %476 = vst [vmem:[#allocation2 + $0x48] sm:$0xff] %v456
      %477 = vst [vmem:[#allocation2 + $0x50] sm:$0xff] %v457
      %478 = vst [vmem:[#allocation2 + $0x58] sm:$0xff] %v458
      %479 = vst [vmem:[#allocation2 + $0x60] sm:$0xff] %v459
      %480 = vst [vmem:[#allocation2 + $0x68] sm:$0xff] %v460
      %481 = vst [vmem:[#allocation2 + $0x70] sm:$0xff] %v461
      %482 = vst [vmem:[#allocation2 + $0x78] sm:$0xff] %v462
    $region25: #{tpu_custom_call.1} parent=1 // pred_fallthru
      _
    %p483 = scmp.gt.s32.totalorder 0, 0
    // Predicated region
    $region26: #{tpu_custom_call.1} parent=1 // pred_check
      %p484 = pneg %p483
    $region27: #{tpu_custom_call.1} parent=1 // pred_check_branch
      %486 = sbr.rel (%p484) target = $region29
    $region28: #{tpu_custom_call.1} parent=1 // pred_region
      %v487 = vld [vmem:[#allocation2] sm:$0xff]
      %v488 = vld [vmem:[#allocation2 + $0x8] sm:$0xff]
      %v489 = vld [vmem:[#allocation2 + $0x10] sm:$0xff]
      %v490 = vld [vmem:[#allocation2 + $0x18] sm:$0xff]
      %v491 = vld [vmem:[#allocation2 + $0x20] sm:$0xff]
      %v492 = vld [vmem:[#allocation2 + $0x28] sm:$0xff]
      %v493 = vld [vmem:[#allocation2 + $0x30] sm:$0xff]
      %v494 = vld [vmem:[#allocation2 + $0x38] sm:$0xff]
      %v495 = vld [vmem:[#allocation2 + $0x40] sm:$0xff]
      %v496 = vld [vmem:[#allocation2 + $0x48] sm:$0xff]
      %v497 = vld [vmem:[#allocation2 + $0x50] sm:$0xff]
      %v498 = vld [vmem:[#allocation2 + $0x58] sm:$0xff]
      %v499 = vld [vmem:[#allocation2 + $0x60] sm:$0xff]
      %v500 = vld [vmem:[#allocation2 + $0x68] sm:$0xff]
      %v501 = vld [vmem:[#allocation2 + $0x70] sm:$0xff]
      %v502 = vld [vmem:[#allocation2 + $0x78] sm:$0xff]
      %v503 = vmax.f32 %v487, %v447
      %v504 = vmax.f32 %v488, %v448
      %v505 = vmax.f32 %v489, %v449
      %v506 = vmax.f32 %v490, %v450
      %v507 = vmax.f32 %v491, %v451
      %v508 = vmax.f32 %v492, %v452
      %v509 = vmax.f32 %v493, %v453
      %v510 = vmax.f32 %v494, %v454
      %v511 = vmax.f32 %v495, %v455
      %v512 = vmax.f32 %v496, %v456
      %v513 = vmax.f32 %v497, %v457
      %v514 = vmax.f32 %v498, %v458
      %v515 = vmax.f32 %v499, %v459
      %v516 = vmax.f32 %v500, %v460
      %v517 = vmax.f32 %v501, %v461
      %v518 = vmax.f32 %v502, %v462
      %519 = vst [vmem:[#allocation2] sm:$0xff] %v503
      %520 = vst [vmem:[#allocation2 + $0x8] sm:$0xff] %v504
      %521 = vst [vmem:[#allocation2 + $0x10] sm:$0xff] %v505
      %522 = vst [vmem:[#allocation2 + $0x18] sm:$0xff] %v506
      %523 = vst [vmem:[#allocation2 + $0x20] sm:$0xff] %v507
      %524 = vst [vmem:[#allocation2 + $0x28] sm:$0xff] %v508
      %525 = vst [vmem:[#allocation2 + $0x30] sm:$0xff] %v509
      %526 = vst [vmem:[#allocation2 + $0x38] sm:$0xff] %v510
      %527 = vst [vmem:[#allocation2 + $0x40] sm:$0xff] %v511
      %528 = vst [vmem:[#allocation2 + $0x48] sm:$0xff] %v512
      %529 = vst [vmem:[#allocation2 + $0x50] sm:$0xff] %v513
      %530 = vst [vmem:[#allocation2 + $0x58] sm:$0xff] %v514
      %531 = vst [vmem:[#allocation2 + $0x60] sm:$0xff] %v515
      %532 = vst [vmem:[#allocation2 + $0x68] sm:$0xff] %v516
      %533 = vst [vmem:[#allocation2 + $0x70] sm:$0xff] %v517
      %534 = vst [vmem:[#allocation2 + $0x78] sm:$0xff] %v518
    $region29: #{tpu_custom_call.1} parent=1 // pred_fallthru
      _
    // Predicated region
    $region30: #{tpu_custom_call.1} parent=1 // pred_check
      %p535 = pneg %p463
    $region31: #{tpu_custom_call.1} parent=1 // pred_check_branch
      %537 = sbr.rel (%p535) target = $region33
    $region32: #{tpu_custom_call.1} parent=1 // pred_region
      %v538 = vld [vmem:[#allocation2] sm:$0xff]
      %v539 = vld [vmem:[#allocation2 + $0x8] sm:$0xff]
      %v540 = vld [vmem:[#allocation2 + $0x10] sm:$0xff]
      %v541 = vld [vmem:[#allocation2 + $0x18] sm:$0xff]
      %v542 = vld [vmem:[#allocation2 + $0x20] sm:$0xff]
      %v543 = vld [vmem:[#allocation2 + $0x28] sm:$0xff]
      %v544 = vld [vmem:[#allocation2 + $0x30] sm:$0xff]
      %v545 = vld [vmem:[#allocation2 + $0x38] sm:$0xff]
      %v546 = vld [vmem:[#allocation2 + $0x40] sm:$0xff]
      %v547 = vld [vmem:[#allocation2 + $0x48] sm:$0xff]
      %v548 = vld [vmem:[#allocation2 + $0x50] sm:$0xff]
      %v549 = vld [vmem:[#allocation2 + $0x58] sm:$0xff]
      %v550 = vld [vmem:[#allocation2 + $0x60] sm:$0xff]
      %v551 = vld [vmem:[#allocation2 + $0x68] sm:$0xff]
      %v552 = vld [vmem:[#allocation2 + $0x70] sm:$0xff]
      %v553 = vld [vmem:[#allocation2 + $0x78] sm:$0xff]
      %554 = vmax.xlane.f32.xlu0 %v538
      %v555 = vpop.xlane.xlu0 %554
      %556 = vmax.xlane.f32.xlu0 %v539
      %v557 = vpop.xlane.xlu0 %556
      %558 = vmax.xlane.f32.xlu0 %v540
      %v559 = vpop.xlane.xlu0 %558
      %560 = vmax.xlane.f32.xlu0 %v541
      %v561 = vpop.xlane.xlu0 %560
      %562 = vmax.xlane.f32.xlu0 %v542
      %v563 = vpop.xlane.xlu0 %562
      %564 = vmax.xlane.f32.xlu0 %v543
      %v565 = vpop.xlane.xlu0 %564
      %566 = vmax.xlane.f32.xlu0 %v544
      %v567 = vpop.xlane.xlu0 %566
      %568 = vmax.xlane.f32.xlu0 %v545
      %v569 = vpop.xlane.xlu0 %568
      %570 = vmax.xlane.f32.xlu0 %v546
      %v571 = vpop.xlane.xlu0 %570
      %572 = vmax.xlane.f32.xlu0 %v547
      %v573 = vpop.xlane.xlu0 %572
      %574 = vmax.xlane.f32.xlu0 %v548
      %v575 = vpop.xlane.xlu0 %574
      %576 = vmax.xlane.f32.xlu0 %v549
      %v577 = vpop.xlane.xlu0 %576
      %578 = vmax.xlane.f32.xlu0 %v550
      %v579 = vpop.xlane.xlu0 %578
      %580 = vmax.xlane.f32.xlu0 %v551
      %v581 = vpop.xlane.xlu0 %580
      %582 = vmax.xlane.f32.xlu0 %v552
      %v583 = vpop.xlane.xlu0 %582
      %584 = vmax.xlane.f32.xlu0 %v553
      %v585 = vpop.xlane.xlu0 %584
      %v602 = vlaneseq
      %v603 = vand.u32 %v602, 127
      %v604 = vlaneseq
      %v605 = vshrl.u32 %v604, 7
      %v606 = vsub.s32 %v603, %v605
      %v607 = vrot.slane %v555, %v606
      %v608 = vadd.s32 %v603, 4294967288
      %v609 = vlaneseq
      %v610 = vshrl.u32 %v609, 7
      %v611 = vsub.s32 %v608, %v610
      %v612 = vrot.slane %v557, %v611
      %vm613 = vcmask 130112
      %v614 = vsel %vm613, %v612, %v607
      %v615 = vadd.s32 %v603, 4294967280
      %v616 = vlaneseq
      %v617 = vshrl.u32 %v616, 7
      %v618 = vsub.s32 %v615, %v617
      %v619 = vrot.slane %v559, %v618
      %vm620 = vcmask 195712
      %v621 = vsel %vm620, %v619, %v614
      %v622 = vadd.s32 %v603, 4294967272
      %v623 = vlaneseq
      %v624 = vshrl.u32 %v623, 7
      %v625 = vsub.s32 %v622, %v624
      %v626 = vrot.slane %v561, %v625
      %vm627 = vcmask 261312
      %v628 = vsel %vm627, %v626, %v621
      %v629 = vadd.s32 %v603, 4294967264
      %v630 = vlaneseq
      %v631 = vshrl.u32 %v630, 7
      %v632 = vsub.s32 %v629, %v631
      %v633 = vrot.slane %v563, %v632
      %vm634 = vcmask 326912
      %v635 = vsel %vm634, %v633, %v628
      %v636 = vadd.s32 %v603, 4294967256
      %v637 = vlaneseq
      %v638 = vshrl.u32 %v637, 7
      %v639 = vsub.s32 %v636, %v638
      %v640 = vrot.slane %v565, %v639
      %vm641 = vcmask 392512
      %v642 = vsel %vm641, %v640, %v635
      %v643 = vadd.s32 %v603, 4294967248
      %v644 = vlaneseq
      %v645 = vshrl.u32 %v644, 7
      %v646 = vsub.s32 %v643, %v645
      %v647 = vrot.slane %v567, %v646
      %vm648 = vcmask 458112
      %v649 = vsel %vm648, %v647, %v642
      %v650 = vadd.s32 %v603, 4294967240
      %v651 = vlaneseq
      %v652 = vshrl.u32 %v651, 7
      %v653 = vsub.s32 %v650, %v652
      %v654 = vrot.slane %v569, %v653
      %vm655 = vcmask 523712
      %v656 = vsel %vm655, %v654, %v649
      %v657 = vlaneseq
      %v658 = vshrl.u32 %v657, 7
      %v659 = vsub.s32 %v603, %v658
      %v660 = vrot.slane %v571, %v659
      %v661 = vlaneseq
      %v662 = vshrl.u32 %v661, 7
      %v663 = vsub.s32 %v608, %v662
      %v664 = vrot.slane %v573, %v663
      %v665 = vsel %vm613, %v664, %v660
      %v666 = vlaneseq
      %v667 = vshrl.u32 %v666, 7
      %v668 = vsub.s32 %v615, %v667
      %v669 = vrot.slane %v575, %v668
      %v670 = vsel %vm620, %v669, %v665
      %v671 = vlaneseq
      %v672 = vshrl.u32 %v671, 7
      %v673 = vsub.s32 %v622, %v672
      %v674 = vrot.slane %v577, %v673
      %v675 = vsel %vm627, %v674, %v670
      %v676 = vlaneseq
      %v677 = vshrl.u32 %v676, 7
      %v678 = vsub.s32 %v629, %v677
      %v679 = vrot.slane %v579, %v678
      %v680 = vsel %vm634, %v679, %v675
      %v681 = vlaneseq
      %v682 = vshrl.u32 %v681, 7
      %v683 = vsub.s32 %v636, %v682
      %v684 = vrot.slane %v581, %v683
      %v685 = vsel %vm641, %v684, %v680
      %v686 = vlaneseq
      %v687 = vshrl.u32 %v686, 7
      %v688 = vsub.s32 %v643, %v687
      %v689 = vrot.slane %v583, %v688
      %v690 = vsel %vm648, %v689, %v685
      %v691 = vlaneseq
      %v692 = vshrl.u32 %v691, 7
      %v693 = vsub.s32 %v650, %v692
      %v694 = vrot.slane %v585, %v693
      %v695 = vsel %vm655, %v694, %v690
      %vm696 = vcmask 1041409
      %v697 = vsel %vm696, %v695, %v656
      %vm699 = vcmask 517120
      %700 = vst.msk [vmem:[#allocation3] sm:$0x3] %vm699, %v697
    $region33: #{tpu_custom_call.1} parent=1 // pred_fallthru
      _
    // Predicated region
    $region34: #{tpu_custom_call.1} parent=1 // pred_check
      _
    $region35: #{tpu_custom_call.1} parent=1 // pred_check_branch
      %702 = sbr.rel (0) target = $region37
    $region36: #{tpu_custom_call.1} parent=1 // pred_region
      %s704 = ssub.s32 32, 32
      %705 = vsyncadd [#allocation4], %s704
      %s707 = sshll.u32 [#allocation3], 4
      %s708 = int_to_ptr.vmem [resolvable:$true] %s707
      %710 = dma.vmem_to_hbm [thread:$0]  %s708, 32, %s5, [#allocation4]
    $region37: #{tpu_custom_call.1} parent=1 // pred_fallthru
      _
    // Predicated region
    $region38: #{tpu_custom_call.1} parent=1 // pred_check
      _
    $region39: #{tpu_custom_call.1} parent=1 // pred_check_branch
      %712 = sbr.rel (0) target = $region41
    $region40: #{tpu_custom_call.1} parent=1 // pred_region
      %713 = dma.done [#allocation4], 32
    $region41: #{tpu_custom_call.1} parent=1 // pred_fallthru
      _
    %714 = vsyncpa [#allocation4], 1

</llo_original>
